<compile_context>
chip_gen: v6e
topology: v6e:2x2x1
jax: 0.10.0
libtpu: 0.0.40
codegen_flags: <defaults>
</compile_context>

<pallas_src>
import functools
import math

import jax
import jax.numpy as jnp
from jax import lax
from jax.experimental import pallas as pl
from jax.experimental.pallas import tpu as pltpu

_MIB = 1 << 20


def get_alibi_slopes(n: int) -> list[float]:
    def get_slopes_power_of_2(n):
        start = 2 ** (-(2 ** (-(math.log2(n) - 3))))
        ratio = start
        return [start * ratio ** i for i in range(n)]

    if math.log2(n).is_integer():
        return get_slopes_power_of_2(n)
    closest = 2 ** math.floor(math.log2(n))
    return (get_slopes_power_of_2(closest)
            + get_alibi_slopes(2 * closest)[0::2][: n - closest])


def _round_up(x: int, m: int) -> int:
    return ((x + m - 1) // m) * m


def _pick_tile(n: int, preferred: int) -> int:
    """Largest multiple-of-8 divisor of n that is <= preferred (else n)."""
    if n <= preferred:
        return n
    for t in range(preferred, 7, -1):
        if t % 8 == 0 and n % t == 0:
            return t
    return n   # see TODO(synk) above: should pad + mask instead


def _pick_col_tile(d: int, itemsize: int, budget_bytes: int = 12 * _MIB) -> int:
    """Weight column tile: a multiple of 128 dividing d (or d itself if small)."""
    if d % 128 != 0:
        return d
    tn = 128
    while (d % (tn * 2) == 0 and tn * 2 <= 512
           and 6 * d * (tn * 2) * itemsize <= budget_bytes):
        tn *= 2
    return tn


def _vmem_limit(need_bytes: int) -> int:
    # Explicit scoped-VMEM limit with headroom, capped at v7x's 64 MiB/core.
    return int(min(max(int(1.25 * need_bytes) + 4 * _MIB, 32 * _MIB), 64 * _MIB))


# --------------------------------------------------------------------------
# Kernel 1: q/k/v projections + sink replacement (weight-stationary tiles)
# --------------------------------------------------------------------------
def _qkv_proj_kernel(x_ref, wq_ref, wk_ref, wv_ref, bq_ref, bk_ref, bv_ref,
                     sk_ref, sv_ref, q_ref, k_ref, v_ref,
                     *, num_sink_tokens, sink_rows):
    x = x_ref[0]                                              # (tm, D)
    q = jnp.dot(x, wq_ref[...], preferred_element_type=jnp.float32)
    k = jnp.dot(x, wk_ref[...], preferred_element_type=jnp.float32)
    v = jnp.dot(x, wv_ref[...], preferred_element_type=jnp.float32)
    q = q + bq_ref[...].astype(jnp.float32)                  # (tm, tn)
    k = k + bk_ref[...].astype(jnp.float32)
    v = v + bv_ref[...].astype(jnp.float32)
    q_ref[0] = q.astype(q_ref.dtype)
    k_ref[0] = k.astype(k_ref.dtype)
    v_ref[0] = v.astype(v_ref.dtype)

    # Sink replacement on the first row tile of every sequence:
    #   q[:S] <- 0, k[:S] <- sink_k, v[:S] <- sink_v  (column tile n of each).
    @pl.when(pl.program_id(2) == 0)
    def _():
        row = lax.broadcasted_iota(jnp.int32, (sink_rows, 1), 0)
        sel = row < num_sink_tokens
        q_ref[0, :sink_rows, :] = jnp.where(
            sel, 0.0, q[:sink_rows, :]).astype(q_ref.dtype)
        k_ref[0, :sink_rows, :] = jnp.where(
            sel, sk_ref[...].astype(jnp.float32),
            k[:sink_rows, :]).astype(k_ref.dtype)
        v_ref[0, :sink_rows, :] = jnp.where(
            sel, sv_ref[...].astype(jnp.float32),
            v[:sink_rows, :]).astype(v_ref.dtype)


# --------------------------------------------------------------------------
# Generic linear kernel (used for the un-fused output projection, large D)
# --------------------------------------------------------------------------
def _linear_kernel(x_ref, w_ref, b_ref, o_ref):
    out = jnp.dot(x_ref[0], w_ref[...], preferred_element_type=jnp.float32)
    o_ref[0] = (out + b_ref[...].astype(jnp.float32)).astype(o_ref.dtype)


# --------------------------------------------------------------------------
# Kernel 2: flash attention (causal + ALiBi), triangular grid via prefetch
# --------------------------------------------------------------------------
def _flash_attn_kernel(qi_ref, ki_ref, q_ref, k_ref, v_ref, *rest,
                       num_heads, head_dim, slopes, block, fuse_out):
    if fuse_out:
        wo_ref, bo_ref, o_ref, acc_sc, m_sc, l_sc = rest
    else:
        o_ref, acc_sc, m_sc, l_sc = rest

    t = pl.program_id(1)
    qi = qi_ref[t]
    ki = ki_ref[t]

    @pl.when(ki == 0)
    def _():
        m_sc[...] = jnp.full(m_sc.shape, -jnp.inf, jnp.float32)
        l_sc[...] = jnp.zeros(l_sc.shape, jnp.float32)
        acc_sc[...] = jnp.zeros(acc_sc.shape, jnp.float32)

    # Causal mask + ALiBi column bias shared by all heads.  The -slope*i row
    # term is constant per row and cancels in softmax, so only the column term
    # (relative to the q-tile start, keeping magnitudes small) is used.
    # NOTE: block_q == block_k == block is assumed throughout.
    offs = (ki - qi) * block                                   # kv_start - q_start
    row = lax.broadcasted_iota(jnp.int32, (block, block), 0)
    col = lax.broadcasted_iota(jnp.int32, (block, block), 1)
    mask = (col + offs) <= row
    col_bias = (lax.broadcasted_iota(jnp.float32, (1, block), 1)
                + offs.astype(jnp.float32))                    # (1, TK)

    # TODO(synk): queue several heads' QK pushes back-to-back so head h's
    # softmax VPU work overlaps head h+1's MXU work.
    for h in range(num_heads):                                 # static, small
        sl = slice(h * head_dim, (h + 1) * head_dim)
        qh = q_ref[0, :, sl]                                   # ref slice (TQ, Dh)
        kh = k_ref[0, :, sl]
        vh = v_ref[0, :, sl]
        # 1/sqrt(Dh) was folded into wq/bq by the wrapper.
        s = lax.dot_general(qh, kh, (((1,), (1,)), ((), ())),
                            preferred_element_type=jnp.float32)
        s = s + slopes[h] * col_bias
        s = jnp.where(mask, s, -jnp.inf)

        m_prev = m_sc[h]                                       # (TQ, 128) lane-repl
        l_prev = l_sc[h]
        m_new = jnp.maximum(m_prev, jnp.max(s, axis=-1, keepdims=True))
        alpha = jnp.exp(m_prev - m_new)
        p = jnp.exp(s - m_new[:, 0:1])
        l_sc[h] = alpha * l_prev + jnp.sum(p, axis=-1, keepdims=True)
        m_sc[h] = m_new
        acc_sc[:, sl] = (alpha[:, 0:1] * acc_sc[:, sl]
                         + jnp.dot(p.astype(vh.dtype), vh,
                                   preferred_element_type=jnp.float32))

    # Finalize on the diagonal kv tile (last causal tile for this q tile).
    @pl.when(ki == qi)
    def _():
        for h in range(num_heads):
            sl = slice(h * head_dim, (h + 1) * head_dim)
            inv = pl.reciprocal(l_sc[h][:, 0:1], approx=False)
            acc_sc[:, sl] = acc_sc[:, sl] * inv
        if fuse_out:
            out = jnp.dot(acc_sc[...].astype(wo_ref.dtype), wo_ref[...],
                          preferred_element_type=jnp.float32)
            o_ref[0] = (out + bo_ref[...].astype(jnp.float32)).astype(o_ref.dtype)
        else:
            o_ref[0] = acc_sc[...].astype(o_ref.dtype)


# --------------------------------------------------------------------------
# Wrapper
# --------------------------------------------------------------------------
def sink_kv_self_attention(x, params, *, num_heads, num_sink_tokens,
                           block_seq=256, block_rows=256, fuse_out_proj=None):
    B, L, D = x.shape
    assert D % num_heads == 0
    head_dim = D // num_heads
    slopes = tuple(float(s) for s in get_alibi_slopes(num_heads))
    scale = 1.0 / math.sqrt(head_dim)
    isz = jnp.dtype(x.dtype).itemsize

    # Fold the softmax scale into the q projection (removes H*TQ*TK VPU
    # multiplies per kv tile from the attention kernel).  Run every matmul in
    # the activation dtype (pass bf16 x for bf16 MXU throughput); f32
    # accumulation is preserved via preferred_element_type.
    wq = (params["wq"] * scale).astype(x.dtype)
    bq = (params["bq"] * scale).reshape(1, D).astype(x.dtype)
    wk = params["wk"].astype(x.dtype)
    bk = params["bk"].reshape(1, D).astype(x.dtype)
    wv = params["wv"].astype(x.dtype)
    bv = params["bv"].reshape(1, D).astype(x.dtype)
    wo = params["wo"].astype(x.dtype)
    bo = params["bo"].reshape(1, D).astype(x.dtype)

    # ---- tiles --------------------------------------------------------------
    tm = _pick_tile(L, block_rows)          # projection row tile
    tn = _pick_col_tile(D, isz)             # weight column tile
    n_row = L // tm
    n_col = D // tn

    # Sinks: pad to a sublane multiple (<= first row tile), NOT to L.
    S = num_sink_tokens
    assert 0 < S <= tm, "sink tokens must fit in the first sequence row tile"
    sink_rows = min(tm, _round_up(S, 8))
    sink_k = jnp.zeros((sink_rows, D), x.dtype).at[:S].set(
        params["sink_k"].reshape(S, D).astype(x.dtype))
    sink_v = jnp.zeros((sink_rows, D), x.dtype).at[:S].set(
        params["sink_v"].reshape(S, D).astype(x.dtype))

    # ---- kernel 1: q/k/v projection + sink merge ----------------------------
    proj_kernel = functools.partial(
        _qkv_proj_kernel, num_sink_tokens=S, sink_rows=sink_rows)
    need1 = (2 * tm * D * isz                    # x (double-buffered)
             + 3 * 2 * D * tn * isz              # wq/wk/wv column tiles
             + 3 * 2 * tn * isz                  # biases
             + 2 * 2 * sink_rows * tn * isz      # sinks
             + 3 * 2 * tm * tn * isz)            # q/k/v output tiles
    proj_cost = pl.CostEstimate(
        flops=int(2 * B * L * D * 3 * D), transcendentals=0,
        bytes_accessed=int((4 * B * L * D + 3 * D * D) * isz))
    q, k, v = pl.pallas_call(
        proj_kernel,
        grid=(n_col, B, n_row),                  # weight-stationary ordering
        in_specs=[
            pl.BlockSpec((1, tm, D), lambda n, b, i: (b, i, 0)),        # x
            pl.BlockSpec((D, tn), lambda n, b, i: (0, n)),              # wq
            pl.BlockSpec((D, tn), lambda n, b, i: (0, n)),              # wk
            pl.BlockSpec((D, tn), lambda n, b, i: (0, n)),              # wv
            pl.BlockSpec((1, tn), lambda n, b, i: (0, n)),              # bq
            pl.BlockSpec((1, tn), lambda n, b, i: (0, n)),              # bk
            pl.BlockSpec((1, tn), lambda n, b, i: (0, n)),              # bv
            pl.BlockSpec((sink_rows, tn), lambda n, b, i: (0, n)),      # sink_k
            pl.BlockSpec((sink_rows, tn), lambda n, b, i: (0, n)),      # sink_v
        ],
        out_specs=[
            pl.BlockSpec((1, tm, tn), lambda n, b, i: (b, i, n)),
            pl.BlockSpec((1, tm, tn), lambda n, b, i: (b, i, n)),
            pl.BlockSpec((1, tm, tn), lambda n, b, i: (b, i, n)),
        ],
        out_shape=[jax.ShapeDtypeStruct((B, L, D), x.dtype)] * 3,
        compiler_params=pltpu.CompilerParams(
            dimension_semantics=("parallel", "parallel", "parallel"),
            vmem_limit_bytes=_vmem_limit(need1)),
        cost_estimate=proj_cost,
    )(x, wq, wk, wv, bq, bk, bv, sink_k, sink_v)

    # ---- kernel 2: flash attention (triangular grid) ------------------------
    if fuse_out_proj is None:
        # Keep the (D, D) output weight resident only while its double-buffered
        # footprint is modest; otherwise stream it in a separate kernel.
        fuse_out_proj = (2 * D * D * isz) <= 16 * _MIB

    def attn_need(tq):
        need = (3 * 2 * tq * D * isz             # q/k/v tiles (double-buffered)
                + 2 * tq * D * isz               # output tile
                + tq * D * 4                     # f32 accumulator
                + 2 * num_heads * tq * 128 * 4)  # running max / sum
        if fuse_out_proj:
            need += 2 * D * D * isz + 2 * D * isz
        return need

    t_attn = _pick_tile(L, block_seq)
    while attn_need(t_attn) > 40 * _MIB and t_attn > 128:
        smaller = _pick_tile(L, max(128, t_attn // 2))
        if smaller >= t_attn:
            break
        t_attn = smaller
    n_attn = L // t_attn

    # Triangular (qi, ki) enumeration: only causal tile pairs are visited.
    qi_map = jnp.asarray(
        [qi for qi in range(n_attn) for _ in range(qi + 1)], jnp.int32)
    ki_map = jnp.asarray(
        [ki for qi in range(n_attn) for ki in range(qi + 1)], jnp.int32)
    n_steps = int(qi_map.shape[0])

    attn_kernel = functools.partial(
        _flash_attn_kernel, num_heads=num_heads, head_dim=head_dim,
        slopes=slopes, block=t_attn, fuse_out=fuse_out_proj)

    in_specs = [
        pl.BlockSpec((1, t_attn, D), lambda b, t, qi, ki: (b, qi[t], 0)),   # q
        pl.BlockSpec((1, t_attn, D), lambda b, t, qi, ki: (b, ki[t], 0)),   # k
        pl.BlockSpec((1, t_attn, D), lambda b, t, qi, ki: (b, ki[t], 0)),   # v
    ]
    args = [q, k, v]
    if fuse_out_proj:
        in_specs += [
            pl.BlockSpec((D, D), lambda b, t, qi, ki: (0, 0)),              # wo
            pl.BlockSpec((1, D), lambda b, t, qi, ki: (0, 0)),              # bo
        ]
        args += [wo, bo]

    attn_cost = pl.CostEstimate(
        flops=int(2 * B * L * L * D
                  + (2 * B * L * D * D if fuse_out_proj else 0)),
        transcendentals=int(B * num_heads * L * L // 2),
        bytes_accessed=int((4 * B * L * D
                            + (D * D if fuse_out_proj else 0)) * isz))

    out = pl.pallas_call(
        attn_kernel,
        grid_spec=pltpu.PrefetchScalarGridSpec(
            num_scalar_prefetch=2,
            grid=(B, n_steps),
            in_specs=in_specs,
            out_specs=pl.BlockSpec((1, t_attn, D),
                                   lambda b, t, qi, ki: (b, qi[t], 0)),
            scratch_shapes=[
                pltpu.VMEM((t_attn, D), jnp.float32),                # acc
                pltpu.VMEM((num_heads, t_attn, 128), jnp.float32),   # running max
                pltpu.VMEM((num_heads, t_attn, 128), jnp.float32),   # running sum
            ]),
        out_shape=jax.ShapeDtypeStruct((B, L, D), x.dtype),
        compiler_params=pltpu.CompilerParams(
            dimension_semantics=("parallel", "arbitrary"),
            vmem_limit_bytes=_vmem_limit(attn_need(t_attn))),
        cost_estimate=attn_cost,
    )(qi_map, ki_map, *args)

    if fuse_out_proj:
        return out

    # ---- kernel 3 (large D only): weight-streaming output projection --------
    need3 = (2 * tm * D * isz + 2 * D * tn * isz + 2 * tn * isz
             + 2 * tm * tn * isz)
    out_cost = pl.CostEstimate(
        flops=int(2 * B * L * D * D), transcendentals=0,
        bytes_accessed=int((2 * B * L * D + D * D) * isz))
    return pl.pallas_call(
        _linear_kernel,
        grid=(n_col, B, n_row),
        in_specs=[
            pl.BlockSpec((1, tm, D), lambda n, b, i: (b, i, 0)),
            pl.BlockSpec((D, tn), lambda n, b, i: (0, n)),
            pl.BlockSpec((1, tn), lambda n, b, i: (0, n)),
        ],
        out_specs=pl.BlockSpec((1, tm, tn), lambda n, b, i: (b, i, n)),
        out_shape=jax.ShapeDtypeStruct((B, L, D), x.dtype),
        compiler_params=pltpu.CompilerParams(
            dimension_semantics=("parallel", "parallel", "parallel"),
            vmem_limit_bytes=_vmem_limit(need3)),
        cost_estimate=out_cost,
    )(out, wo, bo)


# --------------------------------------------------------------------------
# Pure-JAX reference mirroring the PyTorch forward (no kv-cache path)
# --------------------------------------------------------------------------
def _reference(x, params, *, num_heads, num_sink_tokens):
    B, L, D = x.shape
    Dh = D // num_heads
    slopes = jnp.asarray(get_alibi_slopes(num_heads), jnp.float32)
    q = (x @ params["wq"] + params["bq"]).reshape(B, L, num_heads, Dh)
    k = (x @ params["wk"] + params["bk"]).reshape(B, L, num_heads, Dh)
    v = (x @ params["wv"] + params["bv"]).reshape(B, L, num_heads, Dh)
    S = num_sink_tokens
    q = q.at[:, :S].set(0.0)
    k = k.at[:, :S].set(jnp.broadcast_to(params["sink_k"], (B, S, num_heads, Dh)))
    v = v.at[:, :S].set(jnp.broadcast_to(params["sink_v"], (B, S, num_heads, Dh)))
    qh = jnp.transpose(q, (0, 2, 1, 3))
    kh = jnp.transpose(k, (0, 2, 1, 3))
    vh = jnp.transpose(v, (0, 2, 1, 3))
    scores = jnp.einsum("bhqd,bhkd->bhqk", qh, kh) / math.sqrt(Dh)
    pos = jnp.arange(L, dtype=jnp.float32)
    rel = pos[None, :] - pos[:, None]
    bias = slopes[:, None, None] * rel[None]
    causal = pos[None, :] <= pos[:, None]
    scores = scores + jnp.where(causal, bias, -jnp.inf)[None]
    p = jax.nn.softmax(scores, axis=-1)
    out = jnp.einsum("bhqk,bhkd->bhqd", p, vh)
    out = jnp.transpose(out, (0, 2, 1, 3)).reshape(B, L, D)
    return out @ params["wo"] + params["bo"]


if __name__ == "__main__":
    B, L, D = 2, 8, 32
    num_heads, num_sink_tokens = 4, 1
    head_dim = D // num_heads

    key = jax.random.PRNGKey(0)
    keys = jax.random.split(key, 11)
    init = lambda k, shape, s: s * jax.random.normal(k, shape, jnp.float32)

    params = {
        "wq": init(keys[0], (D, D), 0.1), "bq": init(keys[1], (D,), 0.05),
        "wk": init(keys[2], (D, D), 0.1), "bk": init(keys[3], (D,), 0.05),
        "wv": init(keys[4], (D, D), 0.1), "bv": init(keys[5], (D,), 0.05),
        "wo": init(keys[6], (D, D), 0.1), "bo": init(keys[7], (D,), 0.05),
        # PyTorch inits these to zeros; small random values actually exercise
        # the sink path (deterministic either way).
        "sink_k": init(keys[8], (num_sink_tokens, num_heads, head_dim), 0.2),
        "sink_v": init(keys[9], (num_sink_tokens, num_heads, head_dim), 0.2),
    }
    x = jax.random.normal(keys[10], (B, L, D), jnp.float32)

    ref = _reference(x, params, num_heads=num_heads,
                     num_sink_tokens=num_sink_tokens)

    # Default path (fused output projection for small D).
    out = sink_kv_self_attention(
        x, params, num_heads=num_heads, num_sink_tokens=num_sink_tokens)
    out = jax.block_until_ready(out)
    assert out.shape == (B, L, D)
    assert jnp.allclose(out, ref, atol=1e-4, rtol=1e-4), (
        float(jnp.max(jnp.abs(out - ref))))

    # Large-D path (un-fused, weight-streaming output projection) -- exercised
    # here at small shapes to keep both branches compiled and verified.
    out2 = sink_kv_self_attention(
        x, params, num_heads=num_heads, num_sink_tokens=num_sink_tokens,
        fuse_out_proj=False)
    out2 = jax.block_until_ready(out2)
    assert jnp.allclose(out2, ref, atol=1e-4, rtol=1e-4), (
        float(jnp.max(jnp.abs(out2 - ref))))

    print("KERNEL_OK")
</pallas_src>

<mosaic_0001>
module attributes {stable_mosaic.version = 11 : i64} {
  func.func @_qkv_proj_kernel(%arg0: i32, %arg1: i32, %arg2: i32, %arg3: memref<1x8x32xf32, #tpu.memory_space<vmem>>, %arg4: memref<32x32xf32, #tpu.memory_space<vmem>>, %arg5: memref<32x32xf32, #tpu.memory_space<vmem>>, %arg6: memref<32x32xf32, #tpu.memory_space<vmem>>, %arg7: memref<1x32xf32, #tpu.memory_space<vmem>>, %arg8: memref<1x32xf32, #tpu.memory_space<vmem>>, %arg9: memref<1x32xf32, #tpu.memory_space<vmem>>, %arg10: memref<8x32xf32, #tpu.memory_space<vmem>>, %arg11: memref<8x32xf32, #tpu.memory_space<vmem>>, %arg12: memref<1x8x32xf32, #tpu.memory_space<vmem>>, %arg13: memref<1x8x32xf32, #tpu.memory_space<vmem>>, %arg14: memref<1x8x32xf32, #tpu.memory_space<vmem>>) attributes {dimension_semantics = [#tpu.dimension_semantics<parallel>, #tpu.dimension_semantics<parallel>, #tpu.dimension_semantics<parallel>], iteration_bounds = array<i64: 1, 2, 1>, scalar_prefetch = 0 : i64, scratch_operands = 0 : i64, tpu.core_type = #tpu.core_type<tc>, window_params = [{transform_indices = @transform_0, window_bounds = array<i64: 1, 8, 32>}, {transform_indices = @transform_1, window_bounds = array<i64: 32, 32>}, {transform_indices = @transform_2, window_bounds = array<i64: 32, 32>}, {transform_indices = @transform_3, window_bounds = array<i64: 32, 32>}, {transform_indices = @transform_4, window_bounds = array<i64: 1, 32>}, {transform_indices = @transform_5, window_bounds = array<i64: 1, 32>}, {transform_indices = @transform_6, window_bounds = array<i64: 1, 32>}, {transform_indices = @transform_7, window_bounds = array<i64: 8, 32>}, {transform_indices = @transform_8, window_bounds = array<i64: 8, 32>}, {transform_indices = @transform_9, window_bounds = array<i64: 1, 8, 32>}, {transform_indices = @transform_10, window_bounds = array<i64: 1, 8, 32>}, {transform_indices = @transform_11, window_bounds = array<i64: 1, 8, 32>}]} {
    %c0 = arith.constant 0 : index
    %c0_0 = arith.constant 0 : index
    %c0_1 = arith.constant 0 : index
    %0 = vector.load %arg3[%c0, %c0_0, %c0_1] : memref<1x8x32xf32, #tpu.memory_space<vmem>>, vector<1x8x32xf32>
    %1 = vector.shape_cast %0 : vector<1x8x32xf32> to vector<8x32xf32>
    %c0_2 = arith.constant 0 : index
    %c0_3 = arith.constant 0 : index
    %2 = vector.load %arg4[%c0_2, %c0_3] : memref<32x32xf32, #tpu.memory_space<vmem>>, vector<32x32xf32>
    %cst = arith.constant dense<0.000000e+00> : vector<8x32xf32>
    %3 = tpu.matmul %1, %2, %cst {dimension_numbers = #tpu.dot_dimension_numbers<[1], [0], [0], [1], [0, 0, 1, 1], [], []>} : vector<8x32xf32>, vector<32x32xf32>, vector<8x32xf32> -> vector<8x32xf32>
    %c0_4 = arith.constant 0 : index
    %c0_5 = arith.constant 0 : index
    %4 = vector.load %arg5[%c0_4, %c0_5] : memref<32x32xf32, #tpu.memory_space<vmem>>, vector<32x32xf32>
    %cst_6 = arith.constant dense<0.000000e+00> : vector<8x32xf32>
    %5 = tpu.matmul %1, %4, %cst_6 {dimension_numbers = #tpu.dot_dimension_numbers<[1], [0], [0], [1], [0, 0, 1, 1], [], []>} : vector<8x32xf32>, vector<32x32xf32>, vector<8x32xf32> -> vector<8x32xf32>
    %c0_7 = arith.constant 0 : index
    %c0_8 = arith.constant 0 : index
    %6 = vector.load %arg6[%c0_7, %c0_8] : memref<32x32xf32, #tpu.memory_space<vmem>>, vector<32x32xf32>
    %cst_9 = arith.constant dense<0.000000e+00> : vector<8x32xf32>
    %7 = tpu.matmul %1, %6, %cst_9 {dimension_numbers = #tpu.dot_dimension_numbers<[1], [0], [0], [1], [0, 0, 1, 1], [], []>} : vector<8x32xf32>, vector<32x32xf32>, vector<8x32xf32> -> vector<8x32xf32>
    %c0_10 = arith.constant 0 : index
    %c0_11 = arith.constant 0 : index
    %8 = vector.load %arg7[%c0_10, %c0_11] : memref<1x32xf32, #tpu.memory_space<vmem>>, vector<1x32xf32>
    %9 = vector.broadcast %8 : vector<1x32xf32> to vector<8x32xf32>
    %10 = arith.addf %3, %9 : vector<8x32xf32>
    %c0_12 = arith.constant 0 : index
    %c0_13 = arith.constant 0 : index
    %11 = vector.load %arg8[%c0_12, %c0_13] : memref<1x32xf32, #tpu.memory_space<vmem>>, vector<1x32xf32>
    %12 = vector.broadcast %11 : vector<1x32xf32> to vector<8x32xf32>
    %13 = arith.addf %5, %12 : vector<8x32xf32>
    %c0_14 = arith.constant 0 : index
    %c0_15 = arith.constant 0 : index
    %14 = vector.load %arg9[%c0_14, %c0_15] : memref<1x32xf32, #tpu.memory_space<vmem>>, vector<1x32xf32>
    %15 = vector.broadcast %14 : vector<1x32xf32> to vector<8x32xf32>
    %16 = arith.addf %7, %15 : vector<8x32xf32>
    %c0_16 = arith.constant 0 : index
    %c0_17 = arith.constant 0 : index
    %c0_18 = arith.constant 0 : index
    %17 = vector.load %arg12[%c0_16, %c0_17, %c0_18] : memref<1x8x32xf32, #tpu.memory_space<vmem>>, vector<1x8x32xf32>
    %18 = vector.shape_cast %17 : vector<1x8x32xf32> to vector<8x32xf32>
    %19 = vector.shape_cast %10 : vector<8x32xf32> to vector<1x8x32xf32>
    tpu.vector_store %arg12[%c0_16, %c0_17, %c0_18], %19 {strides = array<i32>} : memref<1x8x32xf32, #tpu.memory_space<vmem>>, vector<1x8x32xf32>,
    %c0_19 = arith.constant 0 : index
    %c0_20 = arith.constant 0 : index
    %c0_21 = arith.constant 0 : index
    %20 = vector.load %arg13[%c0_19, %c0_20, %c0_21] : memref<1x8x32xf32, #tpu.memory_space<vmem>>, vector<1x8x32xf32>
    %21 = vector.shape_cast %20 : vector<1x8x32xf32> to vector<8x32xf32>
    %22 = vector.shape_cast %13 : vector<8x32xf32> to vector<1x8x32xf32>
    tpu.vector_store %arg13[%c0_19, %c0_20, %c0_21], %22 {strides = array<i32>} : memref<1x8x32xf32, #tpu.memory_space<vmem>>, vector<1x8x32xf32>,
    %c0_22 = arith.constant 0 : index
    %c0_23 = arith.constant 0 : index
    %c0_24 = arith.constant 0 : index
    %23 = vector.load %arg14[%c0_22, %c0_23, %c0_24] : memref<1x8x32xf32, #tpu.memory_space<vmem>>, vector<1x8x32xf32>
    %24 = vector.shape_cast %23 : vector<1x8x32xf32> to vector<8x32xf32>
    %25 = vector.shape_cast %16 : vector<8x32xf32> to vector<1x8x32xf32>
    tpu.vector_store %arg14[%c0_22, %c0_23, %c0_24], %25 {strides = array<i32>} : memref<1x8x32xf32, #tpu.memory_space<vmem>>, vector<1x8x32xf32>,
    %c0_i32 = arith.constant 0 : i32
    %26 = arith.cmpi eq, %arg2, %c0_i32 : i32
    %27 = arith.extui %26 : i1 to i32
    %c0_i32_25 = arith.constant 0 : i32
    %28 = arith.cmpi ne, %27, %c0_i32_25 : i32
    scf.if %28 {
      %29 = tpu.iota {dimensions = array<i32: 0>} : vector<8x1xi32>
      %c1_i32 = arith.constant 1 : i32
      %30 = vector.broadcast %c1_i32 : i32 to vector<8x1xi32>
      %31 = arith.cmpi slt, %29, %30 : vector<8x1xi32>
      %cst_26 = arith.constant 0.000000e+00 : f32
      %32 = vector.shape_cast %31 : vector<8x1xi1> to vector<8x1xi1>
      %33 = vector.broadcast %32 : vector<8x1xi1> to vector<8x32xi1>
      %34 = vector.broadcast %cst_26 : f32 to vector<8x32xf32>
      %35 = arith.select %33, %34, %10 : vector<8x32xi1>, vector<8x32xf32>
      %c0_27 = arith.constant 0 : index
      %c0_28 = arith.constant 0 : index
      %c0_29 = arith.constant 0 : index
      %36 = vector.load %arg12[%c0_27, %c0_28, %c0_29] : memref<1x8x32xf32, #tpu.memory_space<vmem>>, vector<1x8x32xf32>
      %37 = vector.shape_cast %36 : vector<1x8x32xf32> to vector<8x32xf32>
      %38 = vector.shape_cast %35 : vector<8x32xf32> to vector<1x8x32xf32>
      tpu.vector_store %arg12[%c0_27, %c0_28, %c0_29], %38 {strides = array<i32>} : memref<1x8x32xf32, #tpu.memory_space<vmem>>, vector<1x8x32xf32>,
      %c0_30 = arith.constant 0 : index
      %c0_31 = arith.constant 0 : index
      %39 = vector.load %arg10[%c0_30, %c0_31] : memref<8x32xf32, #tpu.memory_space<vmem>>, vector<8x32xf32>
      %40 = vector.shape_cast %31 : vector<8x1xi1> to vector<8x1xi1>
      %41 = vector.broadcast %40 : vector<8x1xi1> to vector<8x32xi1>
      %42 = arith.select %41, %39, %13 : vector<8x32xi1>, vector<8x32xf32>
      %c0_32 = arith.constant 0 : index
      %c0_33 = arith.constant 0 : index
      %c0_34 = arith.constant 0 : index
      %43 = vector.load %arg13[%c0_32, %c0_33, %c0_34] : memref<1x8x32xf32, #tpu.memory_space<vmem>>, vector<1x8x32xf32>
      %44 = vector.shape_cast %43 : vector<1x8x32xf32> to vector<8x32xf32>
      %45 = vector.shape_cast %42 : vector<8x32xf32> to vector<1x8x32xf32>
      tpu.vector_store %arg13[%c0_32, %c0_33, %c0_34], %45 {strides = array<i32>} : memref<1x8x32xf32, #tpu.memory_space<vmem>>, vector<1x8x32xf32>,
      %c0_35 = arith.constant 0 : index
      %c0_36 = arith.constant 0 : index
      %46 = vector.load %arg11[%c0_35, %c0_36] : memref<8x32xf32, #tpu.memory_space<vmem>>, vector<8x32xf32>
      %47 = vector.shape_cast %31 : vector<8x1xi1> to vector<8x1xi1>
      %48 = vector.broadcast %47 : vector<8x1xi1> to vector<8x32xi1>
      %49 = arith.select %48, %46, %16 : vector<8x32xi1>, vector<8x32xf32>
      %c0_37 = arith.constant 0 : index
      %c0_38 = arith.constant 0 : index
      %c0_39 = arith.constant 0 : index
      %50 = vector.load %arg14[%c0_37, %c0_38, %c0_39] : memref<1x8x32xf32, #tpu.memory_space<vmem>>, vector<1x8x32xf32>
      %51 = vector.shape_cast %50 : vector<1x8x32xf32> to vector<8x32xf32>
      %52 = vector.shape_cast %49 : vector<8x32xf32> to vector<1x8x32xf32>
      tpu.vector_store %arg14[%c0_37, %c0_38, %c0_39], %52 {strides = array<i32>} : memref<1x8x32xf32, #tpu.memory_space<vmem>>, vector<1x8x32xf32>,
    } else {
    }
    return
  }
  func.func @transform_0(%arg0: i32, %arg1: i32, %arg2: i32) -> (i32, i32, i32) {
    %c0_i32 = arith.constant 0 : i32
    %c0_i32_0 = arith.constant 0 : i32
    return %arg1, %arg2, %c0_i32 : i32, i32, i32
  }
  func.func @transform_1(%arg0: i32, %arg1: i32, %arg2: i32) -> (i32, i32) {
    %c0_i32 = arith.constant 0 : i32
    %c0_i32_0 = arith.constant 0 : i32
    return %c0_i32, %arg0 : i32, i32
  }
  func.func @transform_2(%arg0: i32, %arg1: i32, %arg2: i32) -> (i32, i32) {
    %c0_i32 = arith.constant 0 : i32
    %c0_i32_0 = arith.constant 0 : i32
    return %c0_i32, %arg0 : i32, i32
  }
  func.func @transform_3(%arg0: i32, %arg1: i32, %arg2: i32) -> (i32, i32) {
    %c0_i32 = arith.constant 0 : i32
    %c0_i32_0 = arith.constant 0 : i32
    return %c0_i32, %arg0 : i32, i32
  }
  func.func @transform_4(%arg0: i32, %arg1: i32, %arg2: i32) -> (i32, i32) {
    %c0_i32 = arith.constant 0 : i32
    %c0_i32_0 = arith.constant 0 : i32
    return %c0_i32, %arg0 : i32, i32
  }
  func.func @transform_5(%arg0: i32, %arg1: i32, %arg2: i32) -> (i32, i32) {
    %c0_i32 = arith.constant 0 : i32
    %c0_i32_0 = arith.constant 0 : i32
    return %c0_i32, %arg0 : i32, i32
  }
  func.func @transform_6(%arg0: i32, %arg1: i32, %arg2: i32) -> (i32, i32) {
    %c0_i32 = arith.constant 0 : i32
    %c0_i32_0 = arith.constant 0 : i32
    return %c0_i32, %arg0 : i32, i32
  }
  func.func @transform_7(%arg0: i32, %arg1: i32, %arg2: i32) -> (i32, i32) {
    %c0_i32 = arith.constant 0 : i32
    %c0_i32_0 = arith.constant 0 : i32
    return %c0_i32, %arg0 : i32, i32
  }
  func.func @transform_8(%arg0: i32, %arg1: i32, %arg2: i32) -> (i32, i32) {
    %c0_i32 = arith.constant 0 : i32
    %c0_i32_0 = arith.constant 0 : i32
    return %c0_i32, %arg0 : i32, i32
  }
  func.func @transform_9(%arg0: i32, %arg1: i32, %arg2: i32) -> (i32, i32, i32) {
    %c0_i32 = arith.constant 0 : i32
    return %arg1, %arg2, %arg0 : i32, i32, i32
  }
  func.func @transform_10(%arg0: i32, %arg1: i32, %arg2: i32) -> (i32, i32, i32) {
    %c0_i32 = arith.constant 0 : i32
    return %arg1, %arg2, %arg0 : i32, i32, i32
  }
  func.func @transform_11(%arg0: i32, %arg1: i32, %arg2: i32) -> (i32, i32, i32) {
    %c0_i32 = arith.constant 0 : i32
    return %arg1, %arg2, %arg0 : i32, i32, i32
  }
}

</mosaic_0001>

<llo_original>
// kernel: tpu_custom_call.1
$region0: #{tpu_custom_call.1}
  #allocation0 [shape = 'u32[]', space=smem, size = 0x4, offset = 0x4, fixed_abs, tag = 'smem constant byte address 0x4 - core index']
  #allocation1 [shape = 'u32[144,128]{1,0:T(1,128)}', space=vmem, size = 0x12000, scoped, tag = 'internal scratch']
  %s0 = inlined_call_operand.hbm [shape: f32[2,8,32], index: 0, kind: input, shape index: {}]
  %s1 = inlined_call_operand.hbm [shape: f32[32,32], index: 1, kind: input, shape index: {}]
  %s2 = inlined_call_operand.hbm [shape: f32[32,32], index: 2, kind: input, shape index: {}]
  %s3 = inlined_call_operand.hbm [shape: f32[32,32], index: 3, kind: input, shape index: {}]
  %s4 = inlined_call_operand.vmem [shape: f32[1,32], index: 4, kind: input, shape index: {}]
  %s5 = inlined_call_operand.vmem [shape: f32[1,32], index: 5, kind: input, shape index: {}]
  %s6 = inlined_call_operand.vmem [shape: f32[1,32], index: 6, kind: input, shape index: {}]
  %s7 = inlined_call_operand.vmem [shape: f32[8,32], index: 7, kind: input, shape index: {}]
  %s8 = inlined_call_operand.hbm [shape: f32[8,32], index: 8, kind: input, shape index: {}]
  %s9 = inlined_call_operand.hbm [shape: f32[2,8,32], index: 9, kind: output, shape index: {0}]
  %s10 = inlined_call_operand.hbm [shape: f32[2,8,32], index: 10, kind: output, shape index: {1}]
  %s11 = inlined_call_operand.hbm [shape: f32[2,8,32], index: 11, kind: output, shape index: {2}]
  %12 = xla_tuple %s9, %s10, %s11
  %s13 = sld [smem:[#allocation0]]
  $region109: #{tpu_custom_call.1} parent=0
    _
  %s15 = ssub.s32 1, %s13
  %s16 = scalar_select 0, %s15, %s13
  $region1: #{tpu_custom_call.1} parent=0
    #allocation2 [shape = 'u8[8192]{0}', space=vmem, size = 0x2000, scoped, tag = 'input window, operand 0']
    #allocation3 [shape = 's32[2]{0}', space=sflag, size = 0x8, scoped, tag = 'scoped memory for tpu_custom_call.1']
    #allocation4 [shape = 's32[2]{0}', space=sflag, size = 0x8, scoped, tag = 'scoped memory for tpu_custom_call.1']
    #allocation5 [shape = 'u8[16384]{0}', space=vmem, size = 0x4000, scoped, tag = 'input window, operand 1, single buffered']
    #allocation6 [shape = 's32[1]{0}', space=sflag, size = 0x4, scoped, tag = 'scoped memory for tpu_custom_call.1']
    #allocation7 [shape = 'u8[16384]{0}', space=vmem, size = 0x4000, scoped, tag = 'input window, operand 2, single buffered']
    #allocation8 [shape = 'u8[16384]{0}', space=vmem, size = 0x4000, scoped, tag = 'input window, operand 3, single buffered']
    #allocation9 [shape = 's32[1]{0}', space=sflag, size = 0x4, scoped, tag = 'scoped memory for tpu_custom_call.1']
    #allocation10 [shape = 'u8[4096]{0}', space=vmem, size = 0x1000, scoped, tag = 'input window, operand 8, single buffered']
    #allocation11 [shape = 'u8[8192]{0}', space=vmem, size = 0x2000, scoped, tag = 'output window, operand 0']
    #allocation12 [shape = 'u8[8192]{0}', space=vmem, size = 0x2000, scoped, tag = 'output window, operand 1']
    #allocation13 [shape = 's32[2]{0}', space=sflag, size = 0x8, scoped, tag = 'scoped memory for tpu_custom_call.1']
    #allocation14 [shape = 'u8[8192]{0}', space=vmem, size = 0x2000, scoped, tag = 'output window, operand 2']
    %17 = vsyncpa [#allocation3], 0
    %s18 = scalar_lea.sflag [#allocation3], 1
    %19 = vsyncpa %s18, 0
    %20 = vsyncpa [#allocation6], 0
    %21 = vsyncpa [#allocation9], 0
    %22 = vsyncpa [#allocation4], 0
    %s23 = scalar_lea.sflag [#allocation4], 1
    %24 = vsyncpa %s23, 0
    %25 = vsyncpa [#allocation13], 0
    %s26 = scalar_lea.sflag [#allocation13], 1
    %27 = vsyncpa %s26, 0
    loop: start=0, step=1, limit=4
    $region2: #{tpu_custom_call.1} parent=1 // loop_pre_header
      _
    $region3: #{tpu_custom_call.1} parent=1 // loop_header
      %s29 = sphi 0, %s33
      %p30 = scmp.ge.s32.totalorder %s29, 4
      %s36 = sphi 0, %s55
      %s37 = sphi 0, %s51
      %s38 = sphi 0, %s47
      %s39 = sphi 0, %s36
      %s40 = sphi 0, %s37
      %s41 = sphi 0, %s38
      %s42 = sphi 0, %s39
      %s43 = sphi 0, %s40
      %s44 = sphi 0, %s41
      %s60 = sphi 0, %s62
      %s63 = sphi 0, %s60
      %s64 = sphi 0, %s63
      %s80 = sphi 0, %s64
      %s86 = sphi 0, %s88
      %s89 = sphi 0, %s86
      %s90 = sphi 0, %s89
      %s106 = sphi 0, %s90
      %s112 = sphi 0, %s114
      %s115 = sphi 0, %s112
      %s116 = sphi 0, %s115
      %s132 = sphi 0, %s116
      %s138 = sphi 0, %s140
      %s141 = sphi 0, %s138
      %s142 = sphi 0, %s141
      %s158 = sphi 0, %s142
      %s164 = sphi 0, %s166
      %s167 = sphi 0, %s164
      %s168 = sphi 0, %s167
      %s184 = sphi 0, %s168
      %s190 = sphi 0, %s192
      %s193 = sphi 0, %s190
      %s194 = sphi 0, %s193
      %s210 = sphi 0, %s194
      %s216 = sphi 0, %s218
      %s219 = sphi 0, %s216
      %s220 = sphi 0, %s219
      %s236 = sphi 0, %s220
      %s242 = sphi 0, %s244
      %s245 = sphi 0, %s242
      %s246 = sphi 0, %s245
      %s262 = sphi 0, %s246
      %s268 = sphi 0, %s270
      %s271 = sphi 0, %s268
      %s272 = sphi 0, %s271
      %s288 = sphi 0, %s272
      %s298 = sphi 0, %s300
      %s301 = sphi 0, %s298
      %s302 = sphi 0, %s301
      %s318 = sphi 0, %s302
      %s328 = sphi 0, %s330
      %s331 = sphi 0, %s328
      %s332 = sphi 0, %s331
      %s348 = sphi 0, %s332
      %s358 = sphi 0, %s360
      %s361 = sphi 0, %s358
      %s362 = sphi 0, %s361
      %s378 = sphi 0, %s362
    $region4: #{tpu_custom_call.1} parent=1 // loop_header_branch
      %32 = sbr.rel (%p30) target = $region8
    $region5: #{tpu_custom_call.1} parent=1 // loop_body
      %s34 = ssub.s32 %s29, 1
      %s35 = ssub.s32 %s29, 2
      %s45 = sadd.s32 1, %s38
      %p46 = scmp.ge.s32.totalorder %s45, 1
      %s47 = scalar_select %p46, 0, %s45
      %s48 = sadd.s32 1, %s37
      %s49 = scalar_select %p46, %s48, %s37
      %p50 = scmp.ge.s32.totalorder %s49, 2
      %s51 = scalar_select %p50, 0, %s49
      %s52 = sadd.s32 1, %s36
      %s53 = scalar_select %p50, %s52, %s36
      %p54 = scmp.ge.s32.totalorder %s53, 1
      %s55 = scalar_select %p54, 0, %s53
      %s56 = ssub.s32 %s37, %s51
      %s57 = ssub.s32 %s38, %s47
      %s58 = sor.u32 %s56, %s57
      %p59 = scmp.eq.s32.totalorder %s58, 0
      %s61 = sadd.s32 %s60, 1
      %s62 = scalar_select %p59, %s60, %s61
      %p65 = pneg %p59
      %p66 = scmp.eq.s32.totalorder %s29, 1
      %p67 = por %p65, %p66
      %p68 = scmp.ne.s32.totalorder %s60, %s63
      %p69 = scmp.eq.s32.totalorder %s29, 0
      %p70 = por %p68, %p69
      %p71 = scmp.ne.s32.totalorder %s60, %s63
      %p72 = scmp.eq.s32.totalorder %s34, 1
      %p73 = por %p71, %p72
      %p74 = scmp.ne.s32.totalorder %s63, %s64
      %p75 = scmp.eq.s32.totalorder %s34, 0
      %p76 = por %p74, %p75
      %p77 = scmp.ne.s32.totalorder %s63, %s64
      %p78 = scmp.eq.s32.totalorder %s35, 1
      %p79 = por %p77, %p78
      %p81 = scmp.ne.s32.totalorder %s64, %s80
      %p82 = scmp.eq.s32.totalorder %s35, 0
      %p83 = por %p81, %p82
      %s84 = ssub.s32 %s36, %s55
      %p85 = scmp.eq.s32.totalorder %s84, 0
      %s87 = sadd.s32 %s86, 1
      %s88 = scalar_select %p85, %s86, %s87
      %p91 = pneg %p85
      %p92 = scmp.eq.s32.totalorder %s29, 1
      %p93 = por %p91, %p92
      %p94 = scmp.ne.s32.totalorder %s86, %s89
      %p95 = scmp.eq.s32.totalorder %s29, 0
      %p96 = por %p94, %p95
      %p97 = scmp.ne.s32.totalorder %s86, %s89
      %p98 = scmp.eq.s32.totalorder %s34, 1
      %p99 = por %p97, %p98
      %p100 = scmp.ne.s32.totalorder %s89, %s90
      %p101 = scmp.eq.s32.totalorder %s34, 0
      %p102 = por %p100, %p101
      %p103 = scmp.ne.s32.totalorder %s89, %s90
      %p104 = scmp.eq.s32.totalorder %s35, 1
      %p105 = por %p103, %p104
      %p107 = scmp.ne.s32.totalorder %s90, %s106
      %p108 = scmp.eq.s32.totalorder %s35, 0
      %p109 = por %p107, %p108
      %s110 = ssub.s32 %s36, %s55
      %p111 = scmp.eq.s32.totalorder %s110, 0
      %s113 = sadd.s32 %s112, 1
      %s114 = scalar_select %p111, %s112, %s113
      %p117 = pneg %p111
      %p118 = scmp.eq.s32.totalorder %s29, 1
      %p119 = por %p117, %p118
      %p120 = scmp.ne.s32.totalorder %s112, %s115
      %p121 = scmp.eq.s32.totalorder %s29, 0
      %p122 = por %p120, %p121
      %p123 = scmp.ne.s32.totalorder %s112, %s115
      %p124 = scmp.eq.s32.totalorder %s34, 1
      %p125 = por %p123, %p124
      %p126 = scmp.ne.s32.totalorder %s115, %s116
      %p127 = scmp.eq.s32.totalorder %s34, 0
      %p128 = por %p126, %p127
      %p129 = scmp.ne.s32.totalorder %s115, %s116
      %p130 = scmp.eq.s32.totalorder %s35, 1
      %p131 = por %p129, %p130
      %p133 = scmp.ne.s32.totalorder %s116, %s132
      %p134 = scmp.eq.s32.totalorder %s35, 0
      %p135 = por %p133, %p134
      %s136 = ssub.s32 %s36, %s55
      %p137 = scmp.eq.s32.totalorder %s136, 0
      %s139 = sadd.s32 %s138, 1
      %s140 = scalar_select %p137, %s138, %s139
      %p143 = pneg %p137
      %p144 = scmp.eq.s32.totalorder %s29, 1
      %p145 = por %p143, %p144
      %p146 = scmp.ne.s32.totalorder %s138, %s141
      %p147 = scmp.eq.s32.totalorder %s29, 0
      %p148 = por %p146, %p147
      %p149 = scmp.ne.s32.totalorder %s138, %s141
      %p150 = scmp.eq.s32.totalorder %s34, 1
      %p151 = por %p149, %p150
      %p152 = scmp.ne.s32.totalorder %s141, %s142
      %p153 = scmp.eq.s32.totalorder %s34, 0
      %p154 = por %p152, %p153
      %p155 = scmp.ne.s32.totalorder %s141, %s142
      %p156 = scmp.eq.s32.totalorder %s35, 1
      %p157 = por %p155, %p156
      %p159 = scmp.ne.s32.totalorder %s142, %s158
      %p160 = scmp.eq.s32.totalorder %s35, 0
      %p161 = por %p159, %p160
      %s162 = ssub.s32 %s36, %s55
      %p163 = scmp.eq.s32.totalorder %s162, 0
      %s165 = sadd.s32 %s164, 1
      %s166 = scalar_select %p163, %s164, %s165
      %p169 = pneg %p163
      %p170 = scmp.eq.s32.totalorder %s29, 1
      %p171 = por %p169, %p170
      %p172 = scmp.ne.s32.totalorder %s164, %s167
      %p173 = scmp.eq.s32.totalorder %s29, 0
      %p174 = por %p172, %p173
      %p175 = scmp.ne.s32.totalorder %s164, %s167
      %p176 = scmp.eq.s32.totalorder %s34, 1
      %p177 = por %p175, %p176
      %p178 = scmp.ne.s32.totalorder %s167, %s168
      %p179 = scmp.eq.s32.totalorder %s34, 0
      %p180 = por %p178, %p179
      %p181 = scmp.ne.s32.totalorder %s167, %s168
      %p182 = scmp.eq.s32.totalorder %s35, 1
      %p183 = por %p181, %p182
      %p185 = scmp.ne.s32.totalorder %s168, %s184
      %p186 = scmp.eq.s32.totalorder %s35, 0
      %p187 = por %p185, %p186
      %s188 = ssub.s32 %s36, %s55
      %p189 = scmp.eq.s32.totalorder %s188, 0
      %s191 = sadd.s32 %s190, 1
      %s192 = scalar_select %p189, %s190, %s191
      %p195 = pneg %p189
      %p196 = scmp.eq.s32.totalorder %s29, 1
      %p197 = por %p195, %p196
      %p198 = scmp.ne.s32.totalorder %s190, %s193
      %p199 = scmp.eq.s32.totalorder %s29, 0
      %p200 = por %p198, %p199
      %p201 = scmp.ne.s32.totalorder %s190, %s193
      %p202 = scmp.eq.s32.totalorder %s34, 1
      %p203 = por %p201, %p202
      %p204 = scmp.ne.s32.totalorder %s193, %s194
      %p205 = scmp.eq.s32.totalorder %s34, 0
      %p206 = por %p204, %p205
      %p207 = scmp.ne.s32.totalorder %s193, %s194
      %p208 = scmp.eq.s32.totalorder %s35, 1
      %p209 = por %p207, %p208
      %p211 = scmp.ne.s32.totalorder %s194, %s210
      %p212 = scmp.eq.s32.totalorder %s35, 0
      %p213 = por %p211, %p212
      %s214 = ssub.s32 %s36, %s55
      %p215 = scmp.eq.s32.totalorder %s214, 0
      %s217 = sadd.s32 %s216, 1
      %s218 = scalar_select %p215, %s216, %s217
      %p221 = pneg %p215
      %p222 = scmp.eq.s32.totalorder %s29, 1
      %p223 = por %p221, %p222
      %p224 = scmp.ne.s32.totalorder %s216, %s219
      %p225 = scmp.eq.s32.totalorder %s29, 0
      %p226 = por %p224, %p225
      %p227 = scmp.ne.s32.totalorder %s216, %s219
      %p228 = scmp.eq.s32.totalorder %s34, 1
      %p229 = por %p227, %p228
      %p230 = scmp.ne.s32.totalorder %s219, %s220
      %p231 = scmp.eq.s32.totalorder %s34, 0
      %p232 = por %p230, %p231
      %p233 = scmp.ne.s32.totalorder %s219, %s220
      %p234 = scmp.eq.s32.totalorder %s35, 1
      %p235 = por %p233, %p234
      %p237 = scmp.ne.s32.totalorder %s220, %s236
      %p238 = scmp.eq.s32.totalorder %s35, 0
      %p239 = por %p237, %p238
      %s240 = ssub.s32 %s36, %s55
      %p241 = scmp.eq.s32.totalorder %s240, 0
      %s243 = sadd.s32 %s242, 1
      %s244 = scalar_select %p241, %s242, %s243
      %p247 = pneg %p241
      %p248 = scmp.eq.s32.totalorder %s29, 1
      %p249 = por %p247, %p248
      %p250 = scmp.ne.s32.totalorder %s242, %s245
      %p251 = scmp.eq.s32.totalorder %s29, 0
      %p252 = por %p250, %p251
      %p253 = scmp.ne.s32.totalorder %s242, %s245
      %p254 = scmp.eq.s32.totalorder %s34, 1
      %p255 = por %p253, %p254
      %p256 = scmp.ne.s32.totalorder %s245, %s246
      %p257 = scmp.eq.s32.totalorder %s34, 0
      %p258 = por %p256, %p257
      %p259 = scmp.ne.s32.totalorder %s245, %s246
      %p260 = scmp.eq.s32.totalorder %s35, 1
      %p261 = por %p259, %p260
      %p263 = scmp.ne.s32.totalorder %s246, %s262
      %p264 = scmp.eq.s32.totalorder %s35, 0
      %p265 = por %p263, %p264
      %s266 = ssub.s32 %s36, %s55
      %p267 = scmp.eq.s32.totalorder %s266, 0
      %s269 = sadd.s32 %s268, 1
      %s270 = scalar_select %p267, %s268, %s269
      %p273 = pneg %p267
      %p274 = scmp.eq.s32.totalorder %s29, 1
      %p275 = por %p273, %p274
      %p276 = scmp.ne.s32.totalorder %s268, %s271
      %p277 = scmp.eq.s32.totalorder %s29, 0
      %p278 = por %p276, %p277
      %p279 = scmp.ne.s32.totalorder %s268, %s271
      %p280 = scmp.eq.s32.totalorder %s34, 1
      %p281 = por %p279, %p280
      %p282 = scmp.ne.s32.totalorder %s271, %s272
      %p283 = scmp.eq.s32.totalorder %s34, 0
      %p284 = por %p282, %p283
      %p285 = scmp.ne.s32.totalorder %s271, %s272
      %p286 = scmp.eq.s32.totalorder %s35, 1
      %p287 = por %p285, %p286
      %p289 = scmp.ne.s32.totalorder %s272, %s288
      %p290 = scmp.eq.s32.totalorder %s35, 0
      %p291 = por %p289, %p290
      %s292 = ssub.s32 %s37, %s51
      %s293 = ssub.s32 %s38, %s47
      %s294 = sor.u32 %s292, %s293
      %s295 = ssub.s32 %s36, %s55
      %s296 = sor.u32 %s294, %s295
      %p297 = scmp.eq.s32.totalorder %s296, 0
      %s299 = sadd.s32 %s298, 1
      %s300 = scalar_select %p297, %s298, %s299
      %p303 = pneg %p297
      %p304 = scmp.eq.s32.totalorder %s29, 1
      %p305 = por %p303, %p304
      %p306 = scmp.ne.s32.totalorder %s298, %s301
      %p307 = scmp.eq.s32.totalorder %s29, 0
      %p308 = por %p306, %p307
      %p309 = scmp.ne.s32.totalorder %s298, %s301
      %p310 = scmp.eq.s32.totalorder %s34, 1
      %p311 = por %p309, %p310
      %p312 = scmp.ne.s32.totalorder %s301, %s302
      %p313 = scmp.eq.s32.totalorder %s34, 0
      %p314 = por %p312, %p313
      %p315 = scmp.ne.s32.totalorder %s301, %s302
      %p316 = scmp.eq.s32.totalorder %s35, 1
      %p317 = por %p315, %p316
      %p319 = scmp.ne.s32.totalorder %s302, %s318
      %p320 = scmp.eq.s32.totalorder %s35, 0
      %p321 = por %p319, %p320
      %s322 = ssub.s32 %s37, %s51
      %s323 = ssub.s32 %s38, %s47
      %s324 = sor.u32 %s322, %s323
      %s325 = ssub.s32 %s36, %s55
      %s326 = sor.u32 %s324, %s325
      %p327 = scmp.eq.s32.totalorder %s326, 0
      %s329 = sadd.s32 %s328, 1
      %s330 = scalar_select %p327, %s328, %s329
      %p333 = pneg %p327
      %p334 = scmp.eq.s32.totalorder %s29, 1
      %p335 = por %p333, %p334
      %p336 = scmp.ne.s32.totalorder %s328, %s331
      %p337 = scmp.eq.s32.totalorder %s29, 0
      %p338 = por %p336, %p337
      %p339 = scmp.ne.s32.totalorder %s328, %s331
      %p340 = scmp.eq.s32.totalorder %s34, 1
      %p341 = por %p339, %p340
      %p342 = scmp.ne.s32.totalorder %s331, %s332
      %p343 = scmp.eq.s32.totalorder %s34, 0
      %p344 = por %p342, %p343
      %p345 = scmp.ne.s32.totalorder %s331, %s332
      %p346 = scmp.eq.s32.totalorder %s35, 1
      %p347 = por %p345, %p346
      %p349 = scmp.ne.s32.totalorder %s332, %s348
      %p350 = scmp.eq.s32.totalorder %s35, 0
      %p351 = por %p349, %p350
      %s352 = ssub.s32 %s37, %s51
      %s353 = ssub.s32 %s38, %s47
      %s354 = sor.u32 %s352, %s353
      %s355 = ssub.s32 %s36, %s55
      %s356 = sor.u32 %s354, %s355
      %p357 = scmp.eq.s32.totalorder %s356, 0
      %s359 = sadd.s32 %s358, 1
      %s360 = scalar_select %p357, %s358, %s359
      %p363 = pneg %p357
      %p364 = scmp.eq.s32.totalorder %s29, 1
      %p365 = por %p363, %p364
      %p366 = scmp.ne.s32.totalorder %s358, %s361
      %p367 = scmp.eq.s32.totalorder %s29, 0
      %p368 = por %p366, %p367
      %p369 = scmp.ne.s32.totalorder %s358, %s361
      %p370 = scmp.eq.s32.totalorder %s34, 1
      %p371 = por %p369, %p370
      %p372 = scmp.ne.s32.totalorder %s361, %s362
      %p373 = scmp.eq.s32.totalorder %s34, 0
      %p374 = por %p372, %p373
      %p375 = scmp.ne.s32.totalorder %s361, %s362
      %p376 = scmp.eq.s32.totalorder %s35, 1
      %p377 = por %p375, %p376
      %p379 = scmp.ne.s32.totalorder %s362, %s378
      %p380 = scmp.eq.s32.totalorder %s35, 0
      %p381 = por %p379, %p380
      %p382 = scmp.le.s32.totalorder 1, %s29
      %p383 = scmp.lt.s32.totalorder %s29, 3
      %p384 = pnand %p382, %p383
      %p385 = pneg %p384
      // Predicated region
      $region9: #{tpu_custom_call.1} parent=5 // pred_check
        _
      $region10: #{tpu_custom_call.1} parent=5 // pred_check_branch
        %387 = sbr.rel (%p384) target = $region12
      $region11: #{tpu_custom_call.1} parent=5 // pred_region
        %s388 = ssub.s32 %s29, 1
        // Predicated region
        $region13: #{tpu_custom_call.1} parent=11 // pred_check
          %p389 = pneg %p102
        $region14: #{tpu_custom_call.1} parent=11 // pred_check_branch
          %391 = sbr.rel (%p389) target = $region16
        $region15: #{tpu_custom_call.1} parent=11 // pred_region
          %s393 = ssub.s32 512, 512
          %394 = vsyncadd [#allocation6], %s393
          %s395 = smul.addr %s39, 128
          %s396 = scalar_lea.hbm %s1, %s395
          %s397 = sshll.u32 [#allocation5], 4
          %s398 = int_to_ptr.vmem [resolvable:$true] %s397
          %403 = dma.hbm_to_vmem [thread:$0]  %s396, 512, %s398, [#allocation6], 128, 128, 8
        $region16: #{tpu_custom_call.1} parent=11 // pred_fallthru
          _
        // Predicated region
        $region17: #{tpu_custom_call.1} parent=11 // pred_check
          %p404 = pneg %p128
        $region18: #{tpu_custom_call.1} parent=11 // pred_check_branch
          %406 = sbr.rel (%p404) target = $region20
        $region19: #{tpu_custom_call.1} parent=11 // pred_region
          %s408 = ssub.s32 512, 512
          %409 = vsyncadd [#allocation6], %s408
          %s410 = smul.addr %s39, 128
          %s411 = scalar_lea.hbm %s2, %s410
          %s412 = sshll.u32 [#allocation7], 4
          %s413 = int_to_ptr.vmem [resolvable:$true] %s412
          %418 = dma.hbm_to_vmem [thread:$0]  %s411, 512, %s413, [#allocation6], 128, 128, 8
        $region20: #{tpu_custom_call.1} parent=11 // pred_fallthru
          _
        // Predicated region
        $region21: #{tpu_custom_call.1} parent=11 // pred_check
          %p419 = pneg %p154
        $region22: #{tpu_custom_call.1} parent=11 // pred_check_branch
          %421 = sbr.rel (%p419) target = $region24
        $region23: #{tpu_custom_call.1} parent=11 // pred_region
          %s423 = ssub.s32 512, 512
          %424 = vsyncadd [#allocation9], %s423
          %s425 = smul.addr %s39, 128
          %s426 = scalar_lea.hbm %s3, %s425
          %s427 = sshll.u32 [#allocation8], 4
          %s428 = int_to_ptr.vmem [resolvable:$true] %s427
          %433 = dma.hbm_to_vmem [thread:$0]  %s426, 512, %s428, [#allocation9], 128, 128, 8
        $region24: #{tpu_custom_call.1} parent=11 // pred_fallthru
          _
        // Predicated region
        $region25: #{tpu_custom_call.1} parent=11 // pred_check
          %p434 = pneg %p180
        $region26: #{tpu_custom_call.1} parent=11 // pred_check_branch
          %436 = sbr.rel (%p434) target = $region28
        $region27: #{tpu_custom_call.1} parent=11 // pred_region
          %p437 = scmp.lt.s32.totalorder %s39, 0
          %s438 = scalar_select %p437, %s39, 0
          %s439 = scalar_lea.vmem %s4, %s438
        $region28: #{tpu_custom_call.1} parent=11 // pred_fallthru
          _
        // Predicated region
        $region29: #{tpu_custom_call.1} parent=11 // pred_check
          %p440 = pneg %p206
        $region30: #{tpu_custom_call.1} parent=11 // pred_check_branch
          %442 = sbr.rel (%p440) target = $region32
        $region31: #{tpu_custom_call.1} parent=11 // pred_region
          %p443 = scmp.lt.s32.totalorder %s39, 0
          %s444 = scalar_select %p443, %s39, 0
          %s445 = scalar_lea.vmem %s5, %s444
        $region32: #{tpu_custom_call.1} parent=11 // pred_fallthru
          _
        // Predicated region
        $region33: #{tpu_custom_call.1} parent=11 // pred_check
          %p446 = pneg %p232
        $region34: #{tpu_custom_call.1} parent=11 // pred_check_branch
          %448 = sbr.rel (%p446) target = $region36
        $region35: #{tpu_custom_call.1} parent=11 // pred_region
          %p449 = scmp.lt.s32.totalorder %s39, 0
          %s450 = scalar_select %p449, %s39, 0
          %s451 = scalar_lea.vmem %s6, %s450
        $region36: #{tpu_custom_call.1} parent=11 // pred_fallthru
          _
        // Predicated region
        $region37: #{tpu_custom_call.1} parent=11 // pred_check
          %p452 = pneg %p258
        $region38: #{tpu_custom_call.1} parent=11 // pred_check_branch
          %454 = sbr.rel (%p452) target = $region40
        $region39: #{tpu_custom_call.1} parent=11 // pred_region
          %p455 = scmp.lt.s32.totalorder %s39, 0
          %s456 = scalar_select %p455, %s39, 0
          %s457 = smul.addr %s456, 8
          %s458 = scalar_lea.vmem %s7, %s457
        $region40: #{tpu_custom_call.1} parent=11 // pred_fallthru
          _
        // Predicated region
        $region41: #{tpu_custom_call.1} parent=11 // pred_check
          %p459 = pneg %p284
        $region42: #{tpu_custom_call.1} parent=11 // pred_check_branch
          %461 = sbr.rel (%p459) target = $region44
        $region43: #{tpu_custom_call.1} parent=11 // pred_region
          %s463 = ssub.s32 128, 128
          %464 = vsyncadd [#allocation9], %s463
          %s465 = smul.addr %s39, 128
          %s466 = scalar_lea.hbm %s8, %s465
          %s468 = sshll.u32 [#allocation10], 4
          %s469 = int_to_ptr.vmem [resolvable:$true] %s468
          %471 = dma.hbm_to_vmem [thread:$0]  %s466, 128, %s469, [#allocation9]
        $region44: #{tpu_custom_call.1} parent=11 // pred_fallthru
          _
      $region12: #{tpu_custom_call.1} parent=5 // pred_fallthru
        _
      %p472 = scmp.lt.s32.totalorder %s29, 2
      // Predicated region
      $region45: #{tpu_custom_call.1} parent=5 // pred_check
        %p473 = pneg %p472
      $region46: #{tpu_custom_call.1} parent=5 // pred_check_branch
        %475 = sbr.rel (%p473) target = $region48
      $region47: #{tpu_custom_call.1} parent=5 // pred_region
        // Predicated region
        $region49: #{tpu_custom_call.1} parent=47 // pred_check
          %p476 = pneg %p70
        $region50: #{tpu_custom_call.1} parent=47 // pred_check_branch
          %478 = sbr.rel (%p476) target = $region52
        $region51: #{tpu_custom_call.1} parent=47 // pred_region
          %s479 = sand.u32 %s60, 1
          %s480 = scalar_lea.sflag [#allocation3], %s479
          %s481 = sand.u32 %s60, 1
          %s482 = smul.addr %s481, 8
          %s483 = scalar_lea.vmem [#allocation2], %s482
          %s485 = ssub.s32 128, 128
          %486 = vsyncadd %s480, %s485
          %s487 = sadd.s32 %s38, %s37
          %s488 = smul.addr %s487, 128
          %s489 = scalar_lea.hbm %s0, %s488
          %s491 = sshll.u32 %s483, 4
          %s492 = int_to_ptr.vmem [resolvable:$true] %s491
          %494 = dma.hbm_to_vmem [thread:$0]  %s489, 128, %s492, %s480
        $region52: #{tpu_custom_call.1} parent=47 // pred_fallthru
          _
      $region48: #{tpu_custom_call.1} parent=5 // pred_fallthru
        _
      %p495 = scmp.le.s32.totalorder 1, %s29
      %p496 = scmp.lt.s32.totalorder %s29, 3
      %p497 = pnand %p495, %p496
      %p498 = pneg %p497
      // Predicated region
      $region53: #{tpu_custom_call.1} parent=5 // pred_check
        _
      $region54: #{tpu_custom_call.1} parent=5 // pred_check_branch
        %500 = sbr.rel (%p497) target = $region56
      $region55: #{tpu_custom_call.1} parent=5 // pred_region
        %s501 = ssub.s32 %s29, 1
        %s502 = sand.u32 %s63, 1
        %s503 = scalar_lea.sflag [#allocation3], %s502
        %s504 = sand.u32 %s63, 1
        %s505 = smul.addr %s504, 8
        %s506 = scalar_lea.vmem [#allocation2], %s505
        // Predicated region
        $region57: #{tpu_custom_call.1} parent=55 // pred_check
          %p507 = pneg %p76
        $region58: #{tpu_custom_call.1} parent=55 // pred_check_branch
          %509 = sbr.rel (%p507) target = $region60
        $region59: #{tpu_custom_call.1} parent=55 // pred_region
          %510 = dma.done %s503, 128
        $region60: #{tpu_custom_call.1} parent=55 // pred_fallthru
          _
        // Predicated region
        $region61: #{tpu_custom_call.1} parent=55 // pred_check
          %p511 = pneg %p102
        $region62: #{tpu_custom_call.1} parent=55 // pred_check_branch
          %513 = sbr.rel (%p511) target = $region64
        $region63: #{tpu_custom_call.1} parent=55 // pred_region
          %514 = dma.done [#allocation6], 512
        $region64: #{tpu_custom_call.1} parent=55 // pred_fallthru
          _
        // Predicated region
        $region65: #{tpu_custom_call.1} parent=55 // pred_check
          %p515 = pneg %p128
        $region66: #{tpu_custom_call.1} parent=55 // pred_check_branch
          %517 = sbr.rel (%p515) target = $region68
        $region67: #{tpu_custom_call.1} parent=55 // pred_region
          %518 = dma.done [#allocation6], 512
        $region68: #{tpu_custom_call.1} parent=55 // pred_fallthru
          _
        // Predicated region
        $region69: #{tpu_custom_call.1} parent=55 // pred_check
          %p519 = pneg %p154
        $region70: #{tpu_custom_call.1} parent=55 // pred_check_branch
          %521 = sbr.rel (%p519) target = $region72
        $region71: #{tpu_custom_call.1} parent=55 // pred_region
          %522 = dma.done [#allocation9], 512
        $region72: #{tpu_custom_call.1} parent=55 // pred_fallthru
          _
        // Predicated region
        $region73: #{tpu_custom_call.1} parent=55 // pred_check
          %p523 = pneg %p284
        $region74: #{tpu_custom_call.1} parent=55 // pred_check_branch
          %525 = sbr.rel (%p523) target = $region76
        $region75: #{tpu_custom_call.1} parent=55 // pred_region
          %526 = dma.done [#allocation9], 128
        $region76: #{tpu_custom_call.1} parent=55 // pred_fallthru
          _
        %s527 = sand.u32 %s63, 1
        %s528 = scalar_lea.sflag [#allocation3], %s527
        %s529 = sand.u32 %s63, 1
        %s530 = smul.addr %s529, 8
        %s531 = scalar_lea.vmem [#allocation2], %s530
        %p532 = pneg %p76
        %p533 = pneg %p73
        %p534 = pneg %p102
        %p535 = pneg %p99
        %p536 = pneg %p128
        %p537 = pneg %p125
        %p538 = pneg %p154
        %p539 = pneg %p151
        %p540 = scmp.lt.s32.totalorder %s39, 0
        %s541 = scalar_select %p540, %s39, 0
        %s542 = scalar_lea.vmem %s4, %s541
        %p543 = pneg %p180
        %p544 = pneg %p177
        %p545 = scmp.lt.s32.totalorder %s39, 0
        %s546 = scalar_select %p545, %s39, 0
        %s547 = scalar_lea.vmem %s5, %s546
        %p548 = pneg %p206
        %p549 = pneg %p203
        %p550 = scmp.lt.s32.totalorder %s39, 0
        %s551 = scalar_select %p550, %s39, 0
        %s552 = scalar_lea.vmem %s6, %s551
        %p553 = pneg %p232
        %p554 = pneg %p229
        %p555 = scmp.lt.s32.totalorder %s39, 0
        %s556 = scalar_select %p555, %s39, 0
        %s557 = smul.addr %s556, 8
        %s558 = scalar_lea.vmem %s7, %s557
        %p559 = pneg %p258
        %p560 = pneg %p255
        %p561 = pneg %p284
        %p562 = pneg %p281
        %p563 = pneg %p314
        %p564 = pneg %p311
        %s565 = sand.u32 %s301, 1
        %s566 = scalar_lea.sflag [#allocation4], %s565
        %s567 = sand.u32 %s301, 1
        %s568 = smul.addr %s567, 8
        %s569 = scalar_lea.vmem [#allocation11], %s568
        %p570 = pneg %p344
        %p571 = pneg %p341
        %s572 = sand.u32 %s34, 1
        %s573 = scalar_lea.sflag [#allocation13], %s572
        %s574 = sand.u32 %s331, 1
        %s575 = smul.addr %s574, 8
        %s576 = scalar_lea.vmem [#allocation12], %s575
        %p577 = pneg %p374
        %p578 = pneg %p371
        %s579 = sand.u32 %s34, 1
        %s580 = scalar_lea.sflag [#allocation13], %s579
        %s581 = sand.u32 %s361, 1
        %s582 = smul.addr %s581, 8
        %s583 = scalar_lea.vmem [#allocation14], %s582
        %p584 = scmp.lt.s32.totalorder %s39, 0
        %s585 = scalar_select %p584, %s39, 0
        %s586 = scalar_lea.vmem %s4, %s585
        %p587 = scmp.lt.s32.totalorder %s39, 0
        %s588 = scalar_select %p587, %s39, 0
        %s589 = scalar_lea.vmem %s5, %s588
        %p590 = scmp.lt.s32.totalorder %s39, 0
        %s591 = scalar_select %p590, %s39, 0
        %s592 = scalar_lea.vmem %s6, %s591
        %p593 = scmp.lt.s32.totalorder %s39, 0
        %s594 = scalar_select %p593, %s39, 0
        %s595 = smul.addr %s594, 8
        %s596 = scalar_lea.vmem %s7, %s595
        %v597 = vld [vmem:[%s506] sm:$0xff]
        %v598 = vld [vmem:[#allocation5] sm:$0xff]
        %v599 = vld [vmem:[#allocation5 + $0x8] sm:$0xff]
        %v600 = vld [vmem:[#allocation5 + $0x10] sm:$0xff]
        %v601 = vld [vmem:[#allocation5 + $0x18] sm:$0xff]
        %v602 = vld [vmem:[#allocation7] sm:$0xff]
        %v603 = vld [vmem:[#allocation7 + $0x8] sm:$0xff]
        %v604 = vld [vmem:[#allocation7 + $0x10] sm:$0xff]
        %v605 = vld [vmem:[#allocation7 + $0x18] sm:$0xff]
        %v606 = vld [vmem:[#allocation8] sm:$0xff]
        %v607 = vld [vmem:[#allocation8 + $0x8] sm:$0xff]
        %v608 = vld [vmem:[#allocation8 + $0x10] sm:$0xff]
        %v609 = vld [vmem:[#allocation8 + $0x18] sm:$0xff]
        %v610 = vld [vmem:[%s586] sm:$0x1]
        %v612 = vlaneseq
        %v613 = vshrl.u32 %v612, 7
        %v614 = vsub.s32 0, %v613
        %v615 = vrot.slane %v610, %v614
        %vm617 = vcmask 261120
        %v619 = vsel %vm617, %v597, 0
        %621 = vmatprep.subr.mxu0 0.0
        %622 = vmatpush1.msra.mxu0 0.0
        %623 = vmatprep.subr.mxu0 0.0
        %624 = vmatpush1.msra.mxu0 0.0
        %625 = vmatprep.subr.mxu0 0.0
        %626 = vmatpush1.msra.mxu0 0.0
        %627 = vmatprep.subr.mxu0 0.0
        %628 = vmatpush1.msra.mxu0 0.0
        %629 = vmatprep.subr.mxu0 0.0
        %630 = vmatpush1.msra.mxu0 0.0
        %631 = vmatprep.subr.mxu0 0.0
        %632 = vmatpush1.msra.mxu0 0.0
        %633 = vmatprep.subr.mxu0 0.0
        %634 = vmatpush1.msra.mxu0 0.0
        %635 = vmatprep.subr.mxu0 0.0
        %636 = vmatpush1.msra.mxu0 0.0
        %637 = vmatprep.subr.mxu0 0.0
        %638 = vmatpush1.msra.mxu0 0.0
        %639 = vmatprep.subr.mxu0 0.0
        %640 = vmatpush1.msra.mxu0 0.0
        %641 = vmatprep.subr.mxu0 0.0
        %642 = vmatpush1.msra.mxu0 0.0
        %643 = vmatprep.subr.mxu0 0.0
        %644 = vmatpush1.msra.mxu0 0.0
        %645 = vmatprep.subr.mxu0 0.0
        %646 = vmatpush1.msra.mxu0 %v601
        %647 = vmatprep.subr.mxu0 0.0
        %648 = vmatpush1.msra.mxu0 %v600
        %649 = vmatprep.subr.mxu0 0.0
        %650 = vmatpush1.msra.mxu0 %v599
        %651 = vmatprep.subr.mxu0 0.0
        %652 = vmatpush1.msra.mxu0 %v598
        %653 = vmatprep.subr.mxu0 0.0
        %654 = vmatpush2.msra.mxu0 0.0
        %655 = vmatprep.subr.mxu0 0.0
        %656 = vmatpush2.msra.mxu0 0.0
        %657 = vmatprep.subr.mxu0 0.0
        %658 = vmatpush2.msra.mxu0 0.0
        %659 = vmatprep.subr.mxu0 0.0
        %660 = vmatpush2.msra.mxu0 0.0
        %661 = vmatprep.subr.mxu0 0.0
        %662 = vmatpush2.msra.mxu0 0.0
        %663 = vmatprep.subr.mxu0 0.0
        %664 = vmatpush2.msra.mxu0 0.0
        %665 = vmatprep.subr.mxu0 0.0
        %666 = vmatpush2.msra.mxu0 0.0
        %667 = vmatprep.subr.mxu0 0.0
        %668 = vmatpush2.msra.mxu0 0.0
        %669 = vmatprep.subr.mxu0 0.0
        %670 = vmatpush2.msra.mxu0 0.0
        %671 = vmatprep.subr.mxu0 0.0
        %672 = vmatpush2.msra.mxu0 0.0
        %673 = vmatprep.subr.mxu0 0.0
        %674 = vmatpush2.msra.mxu0 0.0
        %675 = vmatprep.subr.mxu0 0.0
        %676 = vmatpush2.msra.mxu0 0.0
        %677 = vmatprep.subr.mxu0 0.0
        %678 = vmatpush2.msra.mxu0 0.0
        %679 = vmatprep.subr.mxu0 0.0
        %680 = vmatpush2.msra.mxu0 0.0
        %681 = vmatprep.subr.mxu0 0.0
        %682 = vmatpush2.msra.mxu0 0.0
        %683 = vmatprep.subr.mxu0 0.0
        %684 = vmatpush2.msra.mxu0 0.0
        %685 = vmatprep.mubr.f32.mxu0 0.0
        %686 = vmatmul.mubr.f32.gmra.mxu0 %v619
        %v687 = vpop.f32.mrf.mxu0
        %v688 = vadd.f32 %v615, %v687
        %v689 = vpop.f32.mrf.mxu0
        %690 = vdwg.mxu0
        %v691 = vld [vmem:[%s589] sm:$0x1]
        %v693 = vlaneseq
        %v694 = vshrl.u32 %v693, 7
        %v695 = vsub.s32 0, %v694
        %v696 = vrot.slane %v691, %v695
        %698 = vmatprep.subr.mxu0 0.0
        %699 = vmatpush1.msra.mxu0 0.0
        %700 = vmatprep.subr.mxu0 0.0
        %701 = vmatpush1.msra.mxu0 0.0
        %702 = vmatprep.subr.mxu0 0.0
        %703 = vmatpush1.msra.mxu0 0.0
        %704 = vmatprep.subr.mxu0 0.0
        %705 = vmatpush1.msra.mxu0 0.0
        %706 = vmatprep.subr.mxu0 0.0
        %707 = vmatpush1.msra.mxu0 0.0
        %708 = vmatprep.subr.mxu0 0.0
        %709 = vmatpush1.msra.mxu0 0.0
        %710 = vmatprep.subr.mxu0 0.0
        %711 = vmatpush1.msra.mxu0 0.0
        %712 = vmatprep.subr.mxu0 0.0
        %713 = vmatpush1.msra.mxu0 0.0
        %714 = vmatprep.subr.mxu0 0.0
        %715 = vmatpush1.msra.mxu0 0.0
        %716 = vmatprep.subr.mxu0 0.0
        %717 = vmatpush1.msra.mxu0 0.0
        %718 = vmatprep.subr.mxu0 0.0
        %719 = vmatpush1.msra.mxu0 0.0
        %720 = vmatprep.subr.mxu0 0.0
        %721 = vmatpush1.msra.mxu0 0.0
        %722 = vmatprep.subr.mxu0 0.0
        %723 = vmatpush1.msra.mxu0 %v605
        %724 = vmatprep.subr.mxu0 0.0
        %725 = vmatpush1.msra.mxu0 %v604
        %726 = vmatprep.subr.mxu0 0.0
        %727 = vmatpush1.msra.mxu0 %v603
        %728 = vmatprep.subr.mxu0 0.0
        %729 = vmatpush1.msra.mxu0 %v602
        %730 = vmatprep.subr.mxu0 0.0
        %731 = vmatpush2.msra.mxu0 0.0
        %732 = vmatprep.subr.mxu0 0.0
        %733 = vmatpush2.msra.mxu0 0.0
        %734 = vmatprep.subr.mxu0 0.0
        %735 = vmatpush2.msra.mxu0 0.0
        %736 = vmatprep.subr.mxu0 0.0
        %737 = vmatpush2.msra.mxu0 0.0
        %738 = vmatprep.subr.mxu0 0.0
        %739 = vmatpush2.msra.mxu0 0.0
        %740 = vmatprep.subr.mxu0 0.0
        %741 = vmatpush2.msra.mxu0 0.0
        %742 = vmatprep.subr.mxu0 0.0
        %743 = vmatpush2.msra.mxu0 0.0
        %744 = vmatprep.subr.mxu0 0.0
        %745 = vmatpush2.msra.mxu0 0.0
        %746 = vmatprep.subr.mxu0 0.0
        %747 = vmatpush2.msra.mxu0 0.0
        %748 = vmatprep.subr.mxu0 0.0
        %749 = vmatpush2.msra.mxu0 0.0
        %750 = vmatprep.subr.mxu0 0.0
        %751 = vmatpush2.msra.mxu0 0.0
        %752 = vmatprep.subr.mxu0 0.0
        %753 = vmatpush2.msra.mxu0 0.0
        %754 = vmatprep.subr.mxu0 0.0
        %755 = vmatpush2.msra.mxu0 0.0
        %756 = vmatprep.subr.mxu0 0.0
        %757 = vmatpush2.msra.mxu0 0.0
        %758 = vmatprep.subr.mxu0 0.0
        %759 = vmatpush2.msra.mxu0 0.0
        %760 = vmatprep.subr.mxu0 0.0
        %761 = vmatpush2.msra.mxu0 0.0
        %762 = vmatprep.mubr.f32.mxu0 0.0
        %763 = vmatmul.mubr.f32.gmra.mxu0 %v619
        %v764 = vpop.f32.mrf.mxu0
        %v765 = vadd.f32 %v696, %v764
        %v766 = vpop.f32.mrf.mxu0
        %767 = vdwg.mxu0
        %v768 = vld [vmem:[%s592] sm:$0x1]
        %v770 = vlaneseq
        %v771 = vshrl.u32 %v770, 7
        %v772 = vsub.s32 0, %v771
        %v773 = vrot.slane %v768, %v772
        %775 = vmatprep.subr.mxu0 0.0
        %776 = vmatpush1.msra.mxu0 0.0
        %777 = vmatprep.subr.mxu0 0.0
        %778 = vmatpush1.msra.mxu0 0.0
        %779 = vmatprep.subr.mxu0 0.0
        %780 = vmatpush1.msra.mxu0 0.0
        %781 = vmatprep.subr.mxu0 0.0
        %782 = vmatpush1.msra.mxu0 0.0
        %783 = vmatprep.subr.mxu0 0.0
        %784 = vmatpush1.msra.mxu0 0.0
        %785 = vmatprep.subr.mxu0 0.0
        %786 = vmatpush1.msra.mxu0 0.0
        %787 = vmatprep.subr.mxu0 0.0
        %788 = vmatpush1.msra.mxu0 0.0
        %789 = vmatprep.subr.mxu0 0.0
        %790 = vmatpush1.msra.mxu0 0.0
        %791 = vmatprep.subr.mxu0 0.0
        %792 = vmatpush1.msra.mxu0 0.0
        %793 = vmatprep.subr.mxu0 0.0
        %794 = vmatpush1.msra.mxu0 0.0
        %795 = vmatprep.subr.mxu0 0.0
        %796 = vmatpush1.msra.mxu0 0.0
        %797 = vmatprep.subr.mxu0 0.0
        %798 = vmatpush1.msra.mxu0 0.0
        %799 = vmatprep.subr.mxu0 0.0
        %800 = vmatpush1.msra.mxu0 %v609
        %801 = vmatprep.subr.mxu0 0.0
        %802 = vmatpush1.msra.mxu0 %v608
        %803 = vmatprep.subr.mxu0 0.0
        %804 = vmatpush1.msra.mxu0 %v607
        %805 = vmatprep.subr.mxu0 0.0
        %806 = vmatpush1.msra.mxu0 %v606
        %807 = vmatprep.subr.mxu0 0.0
        %808 = vmatpush2.msra.mxu0 0.0
        %809 = vmatprep.subr.mxu0 0.0
        %810 = vmatpush2.msra.mxu0 0.0
        %811 = vmatprep.subr.mxu0 0.0
        %812 = vmatpush2.msra.mxu0 0.0
        %813 = vmatprep.subr.mxu0 0.0
        %814 = vmatpush2.msra.mxu0 0.0
        %815 = vmatprep.subr.mxu0 0.0
        %816 = vmatpush2.msra.mxu0 0.0
        %817 = vmatprep.subr.mxu0 0.0
        %818 = vmatpush2.msra.mxu0 0.0
        %819 = vmatprep.subr.mxu0 0.0
        %820 = vmatpush2.msra.mxu0 0.0
        %821 = vmatprep.subr.mxu0 0.0
        %822 = vmatpush2.msra.mxu0 0.0
        %823 = vmatprep.subr.mxu0 0.0
        %824 = vmatpush2.msra.mxu0 0.0
        %825 = vmatprep.subr.mxu0 0.0
        %826 = vmatpush2.msra.mxu0 0.0
        %827 = vmatprep.subr.mxu0 0.0
        %828 = vmatpush2.msra.mxu0 0.0
        %829 = vmatprep.subr.mxu0 0.0
        %830 = vmatpush2.msra.mxu0 0.0
        %831 = vmatprep.subr.mxu0 0.0
        %832 = vmatpush2.msra.mxu0 0.0
        %833 = vmatprep.subr.mxu0 0.0
        %834 = vmatpush2.msra.mxu0 0.0
        %835 = vmatprep.subr.mxu0 0.0
        %836 = vmatpush2.msra.mxu0 0.0
        %837 = vmatprep.subr.mxu0 0.0
        %838 = vmatpush2.msra.mxu0 0.0
        %839 = vmatprep.mubr.f32.mxu0 0.0
        %840 = vmatmul.mubr.f32.gmra.mxu0 %v619
        %v841 = vpop.f32.mrf.mxu0
        %v842 = vadd.f32 %v773, %v841
        %v843 = vpop.f32.mrf.mxu0
        %844 = vdwg.mxu0
        %845 = vst.msk [vmem:[%s569] sm:$0xff] %vm617, %v688
        %846 = vst.msk [vmem:[%s576] sm:$0xff] %vm617, %v765
        %847 = vst.msk [vmem:[%s583] sm:$0xff] %vm617, %v842
        %p848 = scmp.eq.s32.totalorder %s41, 0
        // Predicated region
        $region77: #{tpu_custom_call.1} parent=55 // pred_check
          %p849 = pneg %p848
        $region78: #{tpu_custom_call.1} parent=55 // pred_check_branch
          %851 = sbr.rel (%p849) target = $region80
        $region79: #{tpu_custom_call.1} parent=55 // pred_region
          %v852 = vlaneseq
          %v853 = vshrl.u32 %v852, 7
          %vm854 = vcmp.lt.s32.totalorder %v853, 1
          %v855 = vsel %vm854, 1, 0
          %vm856 = vcmp.eq.s32.totalorder %v855, 1
          %v857 = vsel %vm856, 0.0, %v688
          %858 = vst.msk [vmem:[%s569] sm:$0xff] %vm617, %v857
          %v859 = vld [vmem:[%s596] sm:$0xff]
          %v860 = vsel %vm856, %v859, %v765
          %861 = vst.msk [vmem:[%s576] sm:$0xff] %vm617, %v860
          %v862 = vld [vmem:[#allocation10] sm:$0xff]
          %v863 = vsel %vm856, %v862, %v842
          %864 = vst.msk [vmem:[%s583] sm:$0xff] %vm617, %v863
        $region80: #{tpu_custom_call.1} parent=55 // pred_fallthru
          _
        %s865 = sand.u32 %s301, 1
        %s866 = scalar_lea.sflag [#allocation4], %s865
        %s867 = sand.u32 %s301, 1
        %s868 = smul.addr %s867, 8
        %s869 = scalar_lea.vmem [#allocation11], %s868
        %s870 = sand.u32 %s34, 1
        %s871 = scalar_lea.sflag [#allocation13], %s870
        %s872 = sand.u32 %s331, 1
        %s873 = smul.addr %s872, 8
        %s874 = scalar_lea.vmem [#allocation12], %s873
        %s875 = sand.u32 %s34, 1
        %s876 = scalar_lea.sflag [#allocation13], %s875
        %s877 = sand.u32 %s361, 1
        %s878 = smul.addr %s877, 8
        %s879 = scalar_lea.vmem [#allocation14], %s878
        // Predicated region
        $region81: #{tpu_custom_call.1} parent=55 // pred_check
          %p880 = pneg %p311
        $region82: #{tpu_custom_call.1} parent=55 // pred_check_branch
          %882 = sbr.rel (%p880) target = $region84
        $region83: #{tpu_custom_call.1} parent=55 // pred_region
          %s884 = ssub.s32 128, 128
          %885 = vsyncadd %s866, %s884
          %s886 = sadd.s32 %s39, %s41
          %s887 = sadd.s32 %s886, %s40
          %s888 = smul.addr %s887, 128
          %s889 = scalar_lea.hbm %s9, %s888
          %s891 = sshll.u32 %s869, 4
          %s892 = int_to_ptr.vmem [resolvable:$true] %s891
          %894 = dma.vmem_to_hbm [thread:$0]  %s892, 128, %s889, %s866
        $region84: #{tpu_custom_call.1} parent=55 // pred_fallthru
          _
        // Predicated region
        $region85: #{tpu_custom_call.1} parent=55 // pred_check
          %p895 = pneg %p341
        $region86: #{tpu_custom_call.1} parent=55 // pred_check_branch
          %897 = sbr.rel (%p895) target = $region88
        $region87: #{tpu_custom_call.1} parent=55 // pred_region
          %s899 = ssub.s32 128, 128
          %900 = vsyncadd %s871, %s899
          %s901 = sadd.s32 %s39, %s41
          %s902 = sadd.s32 %s901, %s40
          %s903 = smul.addr %s902, 128
          %s904 = scalar_lea.hbm %s10, %s903
          %s906 = sshll.u32 %s874, 4
          %s907 = int_to_ptr.vmem [resolvable:$true] %s906
          %909 = dma.vmem_to_hbm [thread:$0]  %s907, 128, %s904, %s871
        $region88: #{tpu_custom_call.1} parent=55 // pred_fallthru
          _
        // Predicated region
        $region89: #{tpu_custom_call.1} parent=55 // pred_check
          %p910 = pneg %p371
        $region90: #{tpu_custom_call.1} parent=55 // pred_check_branch
          %912 = sbr.rel (%p910) target = $region92
        $region91: #{tpu_custom_call.1} parent=55 // pred_region
          %s914 = ssub.s32 128, 128
          %915 = vsyncadd %s876, %s914
          %s916 = sadd.s32 %s39, %s41
          %s917 = sadd.s32 %s916, %s40
          %s918 = smul.addr %s917, 128
          %s919 = scalar_lea.hbm %s11, %s918
          %s921 = sshll.u32 %s879, 4
          %s922 = int_to_ptr.vmem [resolvable:$true] %s921
          %924 = dma.vmem_to_hbm [thread:$0]  %s922, 128, %s919, %s876
        $region92: #{tpu_custom_call.1} parent=55 // pred_fallthru
          _
      $region56: #{tpu_custom_call.1} parent=5 // pred_fallthru
        _
      %p925 = scmp.le.s32.totalorder 2, %s29
      // Predicated region
      $region93: #{tpu_custom_call.1} parent=5 // pred_check
        %p926 = pneg %p925
      $region94: #{tpu_custom_call.1} parent=5 // pred_check_branch
        %928 = sbr.rel (%p926) target = $region96
      $region95: #{tpu_custom_call.1} parent=5 // pred_region
        %s929 = ssub.s32 %s29, 2
        // Predicated region
        $region97: #{tpu_custom_call.1} parent=95 // pred_check
          %p930 = pneg %p317
        $region98: #{tpu_custom_call.1} parent=95 // pred_check_branch
          %932 = sbr.rel (%p930) target = $region100
        $region99: #{tpu_custom_call.1} parent=95 // pred_region
          %s933 = sand.u32 %s302, 1
          %s934 = scalar_lea.sflag [#allocation4], %s933
          %s935 = sand.u32 %s302, 1
          %s936 = smul.addr %s935, 8
          %s937 = scalar_lea.vmem [#allocation11], %s936
          %938 = dma.done %s934, 128
        $region100: #{tpu_custom_call.1} parent=95 // pred_fallthru
          _
        // Predicated region
        $region101: #{tpu_custom_call.1} parent=95 // pred_check
          %p939 = pneg %p347
        $region102: #{tpu_custom_call.1} parent=95 // pred_check_branch
          %941 = sbr.rel (%p939) target = $region104
        $region103: #{tpu_custom_call.1} parent=95 // pred_region
          %s942 = sand.u32 %s35, 1
          %s943 = scalar_lea.sflag [#allocation13], %s942
          %s944 = sand.u32 %s332, 1
          %s945 = smul.addr %s944, 8
          %s946 = scalar_lea.vmem [#allocation12], %s945
          %947 = dma.done %s943, 128
        $region104: #{tpu_custom_call.1} parent=95 // pred_fallthru
          _
        // Predicated region
        $region105: #{tpu_custom_call.1} parent=95 // pred_check
          %p948 = pneg %p377
        $region106: #{tpu_custom_call.1} parent=95 // pred_check_branch
          %950 = sbr.rel (%p948) target = $region108
        $region107: #{tpu_custom_call.1} parent=95 // pred_region
          %s951 = sand.u32 %s35, 1
          %s952 = scalar_lea.sflag [#allocation13], %s951
          %s953 = sand.u32 %s362, 1
          %s954 = smul.addr %s953, 8
          %s955 = scalar_lea.vmem [#allocation14], %s954
          %956 = dma.done %s952, 128
        $region108: #{tpu_custom_call.1} parent=95 // pred_fallthru
          _
      $region96: #{tpu_custom_call.1} parent=5 // pred_fallthru
        _
    $region6: #{tpu_custom_call.1} parent=1 // loop_footer
      %s33 = sadd.s32 1, %s29
    $region7: #{tpu_custom_call.1} parent=1 // loop_footer_branch
      %28 = sbr.rel target = $region3
    $region8: #{tpu_custom_call.1} parent=1 // loop_exit
      _
    %957 = vsyncpa [#allocation3], 1
    %s958 = scalar_lea.sflag [#allocation3], 1
    %959 = vsyncpa %s958, 1
    %960 = vsyncpa [#allocation6], 1
    %961 = vsyncpa [#allocation9], 1
    %962 = vsyncpa [#allocation4], 1
    %s963 = scalar_lea.sflag [#allocation4], 1
    %964 = vsyncpa %s963, 1
    %965 = vsyncpa [#allocation13], 1
    %s966 = scalar_lea.sflag [#allocation13], 1
    %967 = vsyncpa %s966, 1

</llo_original>
